<compile_context>
chip_gen: v5e
topology: v5e:2x2
jax: 0.10.0
libtpu: 0.0.40
codegen_flags: <defaults>
</compile_context>

<pallas_src>
import jax
import jax.numpy as jnp
from jax import lax
from jax.experimental import pallas as pl
from jax.experimental.pallas import tpu as pltpu
import numpy as np

# ----- small config consistent with RNN.forward -----
B = 2      # batch
S = 8      # sequence length
E = 32     # configs.GloVe_embedding_length
H = 16     # configs.RNN_hidden_dim
C = 4      # configs.num_classes


def rnn_kernel(x_ref, w0f_ref, w0b_ref, b0_ref, w0hh_ref,
               w1d_ref, w1a_ref, b1_ref, w1hh_ref,
               wl0_ref, wl1_ref, bl_ref, out_ref):
    f32 = jnp.float32
    x = x_ref[...]                       # (S*B, E) time-major flattened input
    w0hh = w0hh_ref[...]                 # (2H, 2H) block-diag recurrent weight
    w1hh = w1hh_ref[...]

    # Time-reversed input slab, built once outside the recurrence (trace-time
    # list reversal + a single sublane concat; NOT on the serial chain).
    x_steps = [x[s * B:(s + 1) * B, :] for s in range(S)]
    x_rev = jnp.concatenate(x_steps[::-1], axis=0)

    # ---- layer 0: one batched MXU pass producing direction-fused inputs ----
    # row-block s of px0 = [ W_f x(s) + b_f  |  W_b x(S-1-s) + b_b ]
    px0 = (jnp.dot(x, w0f_ref[...], preferred_element_type=f32)
           + jnp.dot(x_rev, w0b_ref[...], preferred_element_type=f32)
           + b0_ref[...])
    px0_steps = [px0[s * B:(s + 1) * B, :] for s in range(S)]  # hoisted slices

    # ---- fused bidirectional recurrence, layer 0 (carry stays in vregs) ----
    # carry at step s: h0_s = [ h_fwd(time=s) | h_bwd(time=S-1-s) ]
    h0 = jnp.tanh(px0_steps[0])          # initial hidden is zero -> skip matmul
    h0_list = [h0]
    for s in range(1, S):                # static unroll, S=8
        h0 = jnp.tanh(px0_steps[s]
                      + jnp.dot(h0, w0hh, preferred_element_type=f32))
        h0_list.append(h0)

    # ---- layer 1: batched projection computed directly from fused carries ---
    # px1 row-block s = h0_s @ W_diag + h0_{S-1-s} @ W_anti + b1
    #                 = [ fwd-proj of y0(s) | bwd-proj of y0(S-1-s) ]
    h0_slab = jnp.concatenate(h0_list, axis=0)           # (S*B, 2H)
    h0_slab_rev = jnp.concatenate(h0_list[::-1], axis=0)  # time-reversed order
    px1 = (jnp.dot(h0_slab, w1d_ref[...], preferred_element_type=f32)
           + jnp.dot(h0_slab_rev, w1a_ref[...], preferred_element_type=f32)
           + b1_ref[...])
    px1_steps = [px1[s * B:(s + 1) * B, :] for s in range(S)]

    # ---- fused bidirectional recurrence, layer 1 ---------------------------
    h1 = jnp.tanh(px1_steps[0])
    for s in range(1, S):
        h1 = jnp.tanh(px1_steps[s]
                      + jnp.dot(h1, w1hh, preferred_element_type=f32))

    # h_n.transpose(0,1).view(B,4H) == [h0_final | h1_final]
    # (order: layer0_fwd, layer0_bwd, layer1_fwd, layer1_bwd);
    # label(concat(...)) realized as split matmuls.
    out_ref[...] = (jnp.dot(h0, wl0_ref[...], preferred_element_type=f32)
                    + jnp.dot(h1, wl1_ref[...], preferred_element_type=f32)
                    + bl_ref[...])


# -------------------- one-time weight repacking (model load) ----------------
def pack_params(p):
    """All transposes / concats / block-diag builds happen HERE, once, at
    model-load time.  The per-call path never touches them again."""
    f = jnp.float32
    zH = jnp.zeros((H, H), f)
    zEH = jnp.zeros((E, H), f)

    def blk(tl, tr, bl_, br):
        return jnp.block([[tl, tr], [bl_, br]]).astype(f)

    # layer 0: padded fwd / bwd input weights (fused output lanes), biases,
    # block-diag recurrent weight
    w0f = jnp.concatenate([p["w_ih_l0"].T, zEH], axis=1)          # (E, 2H)
    w0b = jnp.concatenate([zEH, p["w_ih_l0r"].T], axis=1)         # (E, 2H)
    b0 = jnp.concatenate([p["b_ih_l0"] + p["b_hh_l0"],
                          p["b_ih_l0r"] + p["b_hh_l0r"]])[None, :]
    w0hh = blk(p["w_hh_l0"].T, zH, zH, p["w_hh_l0r"].T)           # (2H, 2H)

    # layer 1: input weight split into the piece applied to the step-s fused
    # carry (diag) and to the step-(S-1-s) fused carry (anti), so the layer-1
    # projection needs no un-fusing of the layer-0 history.
    A_f = p["w_ih_l1"][:, :H].T        # multiplies layer-0 fwd hidden (fwd dir)
    B_f = p["w_ih_l1"][:, H:].T        # multiplies layer-0 bwd hidden (fwd dir)
    A_b = p["w_ih_l1r"][:, :H].T       # multiplies layer-0 fwd hidden (bwd dir)
    B_b = p["w_ih_l1r"][:, H:].T       # multiplies layer-0 bwd hidden (bwd dir)
    w1d = blk(A_f, zH, zH, B_b)                                   # (2H, 2H)
    w1a = blk(zH, A_b, B_f, zH)                                   # (2H, 2H)
    b1 = jnp.concatenate([p["b_ih_l1"] + p["b_hh_l1"],
                          p["b_ih_l1r"] + p["b_hh_l1r"]])[None, :]
    w1hh = blk(p["w_hh_l1"].T, zH, zH, p["w_hh_l1r"].T)

    # label linear split for concat-free application
    wl = p["w_label"].T                        # (4H, C)
    wl0 = wl[:2 * H, :]                        # multiplies [l0_fwd | l0_bwd]
    wl1 = wl[2 * H:, :]                        # multiplies [l1_fwd | l1_bwd]
    bl = p["b_label"][None, :]

    packed = dict(w0f=w0f, w0b=w0b, b0=b0, w0hh=w0hh,
                  w1d=w1d, w1a=w1a, b1=b1, w1hh=w1hh,
                  wl0=wl0, wl1=wl1, bl=bl)
    return jax.tree.map(lambda t: jnp.asarray(t, f), packed)


@jax.jit
def rnn_forward(x, packed):
    """x: (B, S, E) batch_first input_sentences. Returns logits (B, C)."""
    # single fused per-call transform: batch-first -> time-major (S*B, E)
    x_tm = jnp.transpose(x, (1, 0, 2)).reshape(S * B, E).astype(jnp.float32)

    n_in = 12
    vmem = pl.BlockSpec(memory_space=pltpu.MemorySpace.VMEM)
    kernel = pl.pallas_call(
        rnn_kernel,
        out_shape=jax.ShapeDtypeStruct((B, C), jnp.float32),
        in_specs=[vmem] * n_in,
        out_specs=vmem,
        cost_estimate=pl.CostEstimate(flops=190_000, transcendentals=1_024,
                                      bytes_accessed=28_000),
    )
    return kernel(x_tm,
                  packed["w0f"], packed["w0b"], packed["b0"], packed["w0hh"],
                  packed["w1d"], packed["w1a"], packed["b1"], packed["w1hh"],
                  packed["wl0"], packed["wl1"], packed["bl"])


# -------------------- deterministic parameter init --------------------------
def init_params(key):
    ks = jax.random.split(key, 18)
    sc = 0.1

    def n(k, shape):
        return jax.random.normal(k, shape, jnp.float32) * sc

    return dict(
        # layer 0, forward / reverse (PyTorch: weight_ih_l0, weight_ih_l0_reverse, ...)
        w_ih_l0=n(ks[0], (H, E)),    w_hh_l0=n(ks[1], (H, H)),
        b_ih_l0=n(ks[2], (H,)),      b_hh_l0=n(ks[3], (H,)),
        w_ih_l0r=n(ks[4], (H, E)),   w_hh_l0r=n(ks[5], (H, H)),
        b_ih_l0r=n(ks[6], (H,)),     b_hh_l0r=n(ks[7], (H,)),
        # layer 1 (input dim = 2H), forward / reverse
        w_ih_l1=n(ks[8], (H, 2 * H)),  w_hh_l1=n(ks[9], (H, H)),
        b_ih_l1=n(ks[10], (H,)),       b_hh_l1=n(ks[11], (H,)),
        w_ih_l1r=n(ks[12], (H, 2 * H)), w_hh_l1r=n(ks[13], (H, H)),
        b_ih_l1r=n(ks[14], (H,)),       b_hh_l1r=n(ks[15], (H,)),
        # label linear
        w_label=n(ks[16], (C, 4 * H)), b_label=n(ks[17], (C,)),
    )


# -------------------- pure-JAX reference (mirrors PyTorch semantics) --------
def reference_forward(x, p):
    def run_dir(seq_t, w_ih, w_hh, b_ih, b_hh, reverse):
        h0 = jnp.zeros((B, H), jnp.float32)
        xs = seq_t[::-1] if reverse else seq_t

        def step(h, x_t):
            h = jnp.tanh(x_t @ w_ih.T + b_ih + h @ w_hh.T + b_hh)
            return h, h

        h_last, hs = lax.scan(step, h0, xs)
        if reverse:
            hs = hs[::-1]
        return hs, h_last                      # hs time-major (S, B, H)

    seq_t = jnp.transpose(x, (1, 0, 2)).astype(jnp.float32)      # (S, B, E)
    hs_f0, hn_f0 = run_dir(seq_t, p["w_ih_l0"], p["w_hh_l0"],
                           p["b_ih_l0"], p["b_hh_l0"], False)
    hs_b0, hn_b0 = run_dir(seq_t, p["w_ih_l0r"], p["w_hh_l0r"],
                           p["b_ih_l0r"], p["b_hh_l0r"], True)
    y0 = jnp.concatenate([hs_f0, hs_b0], axis=-1)                # (S, B, 2H)
    _, hn_f1 = run_dir(y0, p["w_ih_l1"], p["w_hh_l1"],
                       p["b_ih_l1"], p["b_hh_l1"], False)
    _, hn_b1 = run_dir(y0, p["w_ih_l1r"], p["w_hh_l1r"],
                       p["b_ih_l1r"], p["b_hh_l1r"], True)
    # h_n layout: [l0_fwd, l0_bwd, l1_fwd, l1_bwd]; transpose+view -> (B, 4H)
    h_n_1 = jnp.concatenate([hn_f0, hn_b0, hn_f1, hn_b1], axis=-1)
    return h_n_1 @ p["w_label"].T + p["b_label"]


if __name__ == "__main__":
    # NOTE: the print(...) size dumps in the PyTorch forward have no numerical
    # effect and are omitted.
    key = jax.random.PRNGKey(0)
    k_par, k_x = jax.random.split(key)
    params = init_params(k_par)

    # One-time model-load packing (NOT on the per-call path).
    packed = jax.block_until_ready(pack_params(params))

    input_sentences = jax.random.normal(k_x, (B, S, E), jnp.float32)

    out = jax.block_until_ready(rnn_forward(input_sentences, packed))
    ref = reference_forward(input_sentences, params)

    assert out.shape == (B, C) and out.dtype == jnp.float32
    np.testing.assert_allclose(np.asarray(out), np.asarray(ref),
                               atol=1e-4, rtol=1e-4)
    print("KERNEL_OK")
</pallas_src>

<mosaic_0001>
module attributes {stable_mosaic.version = 11 : i64} {
  func.func @rnn_kernel(%arg0: memref<16x32xf32, #tpu.memory_space<vmem>>, %arg1: memref<32x32xf32, #tpu.memory_space<vmem>>, %arg2: memref<32x32xf32, #tpu.memory_space<vmem>>, %arg3: memref<1x32xf32, #tpu.memory_space<vmem>>, %arg4: memref<32x32xf32, #tpu.memory_space<vmem>>, %arg5: memref<32x32xf32, #tpu.memory_space<vmem>>, %arg6: memref<32x32xf32, #tpu.memory_space<vmem>>, %arg7: memref<1x32xf32, #tpu.memory_space<vmem>>, %arg8: memref<32x32xf32, #tpu.memory_space<vmem>>, %arg9: memref<32x4xf32, #tpu.memory_space<vmem>>, %arg10: memref<32x4xf32, #tpu.memory_space<vmem>>, %arg11: memref<1x4xf32, #tpu.memory_space<vmem>>, %arg12: memref<2x4xf32, #tpu.memory_space<vmem>>) attributes {dimension_semantics = [], scalar_prefetch = 0 : i64, scratch_operands = 0 : i64, tpu.core_type = #tpu.core_type<tc>} {
    %c0 = arith.constant 0 : index
    %c0_0 = arith.constant 0 : index
    %0 = vector.load %arg0[%c0, %c0_0] : memref<16x32xf32, #tpu.memory_space<vmem>>, vector<16x32xf32>
    %c0_1 = arith.constant 0 : index
    %c0_2 = arith.constant 0 : index
    %1 = vector.load %arg4[%c0_1, %c0_2] : memref<32x32xf32, #tpu.memory_space<vmem>>, vector<32x32xf32>
    %c0_3 = arith.constant 0 : index
    %c0_4 = arith.constant 0 : index
    %2 = vector.load %arg8[%c0_3, %c0_4] : memref<32x32xf32, #tpu.memory_space<vmem>>, vector<32x32xf32>
    %3 = vector.extract_strided_slice %0 {offsets = [0, 0], sizes = [2, 32], strides = [1, 1]} : vector<16x32xf32> to vector<2x32xf32>
    %4 = vector.extract_strided_slice %0 {offsets = [2, 0], sizes = [2, 32], strides = [1, 1]} : vector<16x32xf32> to vector<2x32xf32>
    %5 = vector.extract_strided_slice %0 {offsets = [4, 0], sizes = [2, 32], strides = [1, 1]} : vector<16x32xf32> to vector<2x32xf32>
    %6 = vector.extract_strided_slice %0 {offsets = [6, 0], sizes = [2, 32], strides = [1, 1]} : vector<16x32xf32> to vector<2x32xf32>
    %7 = vector.extract_strided_slice %0 {offsets = [8, 0], sizes = [2, 32], strides = [1, 1]} : vector<16x32xf32> to vector<2x32xf32>
    %8 = vector.extract_strided_slice %0 {offsets = [10, 0], sizes = [2, 32], strides = [1, 1]} : vector<16x32xf32> to vector<2x32xf32>
    %9 = vector.extract_strided_slice %0 {offsets = [12, 0], sizes = [2, 32], strides = [1, 1]} : vector<16x32xf32> to vector<2x32xf32>
    %10 = vector.extract_strided_slice %0 {offsets = [14, 0], sizes = [2, 32], strides = [1, 1]} : vector<16x32xf32> to vector<2x32xf32>
    %11 = tpu.concatenate %10, %9, %8, %7, %6, %5, %4, %3 in 0 : vector<2x32xf32>, vector<2x32xf32>, vector<2x32xf32>, vector<2x32xf32>, vector<2x32xf32>, vector<2x32xf32>, vector<2x32xf32>, vector<2x32xf32> -> vector<16x32xf32>
    %c0_5 = arith.constant 0 : index
    %c0_6 = arith.constant 0 : index
    %12 = vector.load %arg1[%c0_5, %c0_6] : memref<32x32xf32, #tpu.memory_space<vmem>>, vector<32x32xf32>
    %cst = arith.constant dense<0.000000e+00> : vector<16x32xf32>
    %13 = tpu.matmul %0, %12, %cst {dimension_numbers = #tpu.dot_dimension_numbers<[1], [0], [0], [1], [0, 0, 1, 1], [], []>} : vector<16x32xf32>, vector<32x32xf32>, vector<16x32xf32> -> vector<16x32xf32>
    %c0_7 = arith.constant 0 : index
    %c0_8 = arith.constant 0 : index
    %14 = vector.load %arg2[%c0_7, %c0_8] : memref<32x32xf32, #tpu.memory_space<vmem>>, vector<32x32xf32>
    %cst_9 = arith.constant dense<0.000000e+00> : vector<16x32xf32>
    %15 = tpu.matmul %11, %14, %cst_9 {dimension_numbers = #tpu.dot_dimension_numbers<[1], [0], [0], [1], [0, 0, 1, 1], [], []>} : vector<16x32xf32>, vector<32x32xf32>, vector<16x32xf32> -> vector<16x32xf32>
    %16 = arith.addf %13, %15 : vector<16x32xf32>
    %c0_10 = arith.constant 0 : index
    %c0_11 = arith.constant 0 : index
    %17 = vector.load %arg3[%c0_10, %c0_11] : memref<1x32xf32, #tpu.memory_space<vmem>>, vector<1x32xf32>
    %18 = vector.broadcast %17 : vector<1x32xf32> to vector<16x32xf32>
    %19 = arith.addf %16, %18 : vector<16x32xf32>
    %20 = vector.extract_strided_slice %19 {offsets = [0, 0], sizes = [2, 32], strides = [1, 1]} : vector<16x32xf32> to vector<2x32xf32>
    %21 = vector.extract_strided_slice %19 {offsets = [2, 0], sizes = [2, 32], strides = [1, 1]} : vector<16x32xf32> to vector<2x32xf32>
    %22 = vector.extract_strided_slice %19 {offsets = [4, 0], sizes = [2, 32], strides = [1, 1]} : vector<16x32xf32> to vector<2x32xf32>
    %23 = vector.extract_strided_slice %19 {offsets = [6, 0], sizes = [2, 32], strides = [1, 1]} : vector<16x32xf32> to vector<2x32xf32>
    %24 = vector.extract_strided_slice %19 {offsets = [8, 0], sizes = [2, 32], strides = [1, 1]} : vector<16x32xf32> to vector<2x32xf32>
    %25 = vector.extract_strided_slice %19 {offsets = [10, 0], sizes = [2, 32], strides = [1, 1]} : vector<16x32xf32> to vector<2x32xf32>
    %26 = vector.extract_strided_slice %19 {offsets = [12, 0], sizes = [2, 32], strides = [1, 1]} : vector<16x32xf32> to vector<2x32xf32>
    %27 = vector.extract_strided_slice %19 {offsets = [14, 0], sizes = [2, 32], strides = [1, 1]} : vector<16x32xf32> to vector<2x32xf32>
    %28 = math.tanh %20 : vector<2x32xf32>
    %cst_12 = arith.constant dense<0.000000e+00> : vector<2x32xf32>
    %29 = tpu.matmul %28, %1, %cst_12 {dimension_numbers = #tpu.dot_dimension_numbers<[1], [0], [0], [1], [0, 0, 1, 1], [], []>} : vector<2x32xf32>, vector<32x32xf32>, vector<2x32xf32> -> vector<2x32xf32>
    %30 = arith.addf %21, %29 : vector<2x32xf32>
    %31 = math.tanh %30 : vector<2x32xf32>
    %cst_13 = arith.constant dense<0.000000e+00> : vector<2x32xf32>
    %32 = tpu.matmul %31, %1, %cst_13 {dimension_numbers = #tpu.dot_dimension_numbers<[1], [0], [0], [1], [0, 0, 1, 1], [], []>} : vector<2x32xf32>, vector<32x32xf32>, vector<2x32xf32> -> vector<2x32xf32>
    %33 = arith.addf %22, %32 : vector<2x32xf32>
    %34 = math.tanh %33 : vector<2x32xf32>
    %cst_14 = arith.constant dense<0.000000e+00> : vector<2x32xf32>
    %35 = tpu.matmul %34, %1, %cst_14 {dimension_numbers = #tpu.dot_dimension_numbers<[1], [0], [0], [1], [0, 0, 1, 1], [], []>} : vector<2x32xf32>, vector<32x32xf32>, vector<2x32xf32> -> vector<2x32xf32>
    %36 = arith.addf %23, %35 : vector<2x32xf32>
    %37 = math.tanh %36 : vector<2x32xf32>
    %cst_15 = arith.constant dense<0.000000e+00> : vector<2x32xf32>
    %38 = tpu.matmul %37, %1, %cst_15 {dimension_numbers = #tpu.dot_dimension_numbers<[1], [0], [0], [1], [0, 0, 1, 1], [], []>} : vector<2x32xf32>, vector<32x32xf32>, vector<2x32xf32> -> vector<2x32xf32>
    %39 = arith.addf %24, %38 : vector<2x32xf32>
    %40 = math.tanh %39 : vector<2x32xf32>
    %cst_16 = arith.constant dense<0.000000e+00> : vector<2x32xf32>
    %41 = tpu.matmul %40, %1, %cst_16 {dimension_numbers = #tpu.dot_dimension_numbers<[1], [0], [0], [1], [0, 0, 1, 1], [], []>} : vector<2x32xf32>, vector<32x32xf32>, vector<2x32xf32> -> vector<2x32xf32>
    %42 = arith.addf %25, %41 : vector<2x32xf32>
    %43 = math.tanh %42 : vector<2x32xf32>
    %cst_17 = arith.constant dense<0.000000e+00> : vector<2x32xf32>
    %44 = tpu.matmul %43, %1, %cst_17 {dimension_numbers = #tpu.dot_dimension_numbers<[1], [0], [0], [1], [0, 0, 1, 1], [], []>} : vector<2x32xf32>, vector<32x32xf32>, vector<2x32xf32> -> vector<2x32xf32>
    %45 = arith.addf %26, %44 : vector<2x32xf32>
    %46 = math.tanh %45 : vector<2x32xf32>
    %cst_18 = arith.constant dense<0.000000e+00> : vector<2x32xf32>
    %47 = tpu.matmul %46, %1, %cst_18 {dimension_numbers = #tpu.dot_dimension_numbers<[1], [0], [0], [1], [0, 0, 1, 1], [], []>} : vector<2x32xf32>, vector<32x32xf32>, vector<2x32xf32> -> vector<2x32xf32>
    %48 = arith.addf %27, %47 : vector<2x32xf32>
    %49 = math.tanh %48 : vector<2x32xf32>
    %50 = tpu.concatenate %28, %31, %34, %37, %40, %43, %46, %49 in 0 : vector<2x32xf32>, vector<2x32xf32>, vector<2x32xf32>, vector<2x32xf32>, vector<2x32xf32>, vector<2x32xf32>, vector<2x32xf32>, vector<2x32xf32> -> vector<16x32xf32>
    %51 = tpu.concatenate %49, %46, %43, %40, %37, %34, %31, %28 in 0 : vector<2x32xf32>, vector<2x32xf32>, vector<2x32xf32>, vector<2x32xf32>, vector<2x32xf32>, vector<2x32xf32>, vector<2x32xf32>, vector<2x32xf32> -> vector<16x32xf32>
    %c0_19 = arith.constant 0 : index
    %c0_20 = arith.constant 0 : index
    %52 = vector.load %arg5[%c0_19, %c0_20] : memref<32x32xf32, #tpu.memory_space<vmem>>, vector<32x32xf32>
    %cst_21 = arith.constant dense<0.000000e+00> : vector<16x32xf32>
    %53 = tpu.matmul %50, %52, %cst_21 {dimension_numbers = #tpu.dot_dimension_numbers<[1], [0], [0], [1], [0, 0, 1, 1], [], []>} : vector<16x32xf32>, vector<32x32xf32>, vector<16x32xf32> -> vector<16x32xf32>
    %c0_22 = arith.constant 0 : index
    %c0_23 = arith.constant 0 : index
    %54 = vector.load %arg6[%c0_22, %c0_23] : memref<32x32xf32, #tpu.memory_space<vmem>>, vector<32x32xf32>
    %cst_24 = arith.constant dense<0.000000e+00> : vector<16x32xf32>
    %55 = tpu.matmul %51, %54, %cst_24 {dimension_numbers = #tpu.dot_dimension_numbers<[1], [0], [0], [1], [0, 0, 1, 1], [], []>} : vector<16x32xf32>, vector<32x32xf32>, vector<16x32xf32> -> vector<16x32xf32>
    %56 = arith.addf %53, %55 : vector<16x32xf32>
    %c0_25 = arith.constant 0 : index
    %c0_26 = arith.constant 0 : index
    %57 = vector.load %arg7[%c0_25, %c0_26] : memref<1x32xf32, #tpu.memory_space<vmem>>, vector<1x32xf32>
    %58 = vector.broadcast %57 : vector<1x32xf32> to vector<16x32xf32>
    %59 = arith.addf %56, %58 : vector<16x32xf32>
    %60 = vector.extract_strided_slice %59 {offsets = [0, 0], sizes = [2, 32], strides = [1, 1]} : vector<16x32xf32> to vector<2x32xf32>
    %61 = vector.extract_strided_slice %59 {offsets = [2, 0], sizes = [2, 32], strides = [1, 1]} : vector<16x32xf32> to vector<2x32xf32>
    %62 = vector.extract_strided_slice %59 {offsets = [4, 0], sizes = [2, 32], strides = [1, 1]} : vector<16x32xf32> to vector<2x32xf32>
    %63 = vector.extract_strided_slice %59 {offsets = [6, 0], sizes = [2, 32], strides = [1, 1]} : vector<16x32xf32> to vector<2x32xf32>
    %64 = vector.extract_strided_slice %59 {offsets = [8, 0], sizes = [2, 32], strides = [1, 1]} : vector<16x32xf32> to vector<2x32xf32>
    %65 = vector.extract_strided_slice %59 {offsets = [10, 0], sizes = [2, 32], strides = [1, 1]} : vector<16x32xf32> to vector<2x32xf32>
    %66 = vector.extract_strided_slice %59 {offsets = [12, 0], sizes = [2, 32], strides = [1, 1]} : vector<16x32xf32> to vector<2x32xf32>
    %67 = vector.extract_strided_slice %59 {offsets = [14, 0], sizes = [2, 32], strides = [1, 1]} : vector<16x32xf32> to vector<2x32xf32>
    %68 = math.tanh %60 : vector<2x32xf32>
    %cst_27 = arith.constant dense<0.000000e+00> : vector<2x32xf32>
    %69 = tpu.matmul %68, %2, %cst_27 {dimension_numbers = #tpu.dot_dimension_numbers<[1], [0], [0], [1], [0, 0, 1, 1], [], []>} : vector<2x32xf32>, vector<32x32xf32>, vector<2x32xf32> -> vector<2x32xf32>
    %70 = arith.addf %61, %69 : vector<2x32xf32>
    %71 = math.tanh %70 : vector<2x32xf32>
    %cst_28 = arith.constant dense<0.000000e+00> : vector<2x32xf32>
    %72 = tpu.matmul %71, %2, %cst_28 {dimension_numbers = #tpu.dot_dimension_numbers<[1], [0], [0], [1], [0, 0, 1, 1], [], []>} : vector<2x32xf32>, vector<32x32xf32>, vector<2x32xf32> -> vector<2x32xf32>
    %73 = arith.addf %62, %72 : vector<2x32xf32>
    %74 = math.tanh %73 : vector<2x32xf32>
    %cst_29 = arith.constant dense<0.000000e+00> : vector<2x32xf32>
    %75 = tpu.matmul %74, %2, %cst_29 {dimension_numbers = #tpu.dot_dimension_numbers<[1], [0], [0], [1], [0, 0, 1, 1], [], []>} : vector<2x32xf32>, vector<32x32xf32>, vector<2x32xf32> -> vector<2x32xf32>
    %76 = arith.addf %63, %75 : vector<2x32xf32>
    %77 = math.tanh %76 : vector<2x32xf32>
    %cst_30 = arith.constant dense<0.000000e+00> : vector<2x32xf32>
    %78 = tpu.matmul %77, %2, %cst_30 {dimension_numbers = #tpu.dot_dimension_numbers<[1], [0], [0], [1], [0, 0, 1, 1], [], []>} : vector<2x32xf32>, vector<32x32xf32>, vector<2x32xf32> -> vector<2x32xf32>
    %79 = arith.addf %64, %78 : vector<2x32xf32>
    %80 = math.tanh %79 : vector<2x32xf32>
    %cst_31 = arith.constant dense<0.000000e+00> : vector<2x32xf32>
    %81 = tpu.matmul %80, %2, %cst_31 {dimension_numbers = #tpu.dot_dimension_numbers<[1], [0], [0], [1], [0, 0, 1, 1], [], []>} : vector<2x32xf32>, vector<32x32xf32>, vector<2x32xf32> -> vector<2x32xf32>
    %82 = arith.addf %65, %81 : vector<2x32xf32>
    %83 = math.tanh %82 : vector<2x32xf32>
    %cst_32 = arith.constant dense<0.000000e+00> : vector<2x32xf32>
    %84 = tpu.matmul %83, %2, %cst_32 {dimension_numbers = #tpu.dot_dimension_numbers<[1], [0], [0], [1], [0, 0, 1, 1], [], []>} : vector<2x32xf32>, vector<32x32xf32>, vector<2x32xf32> -> vector<2x32xf32>
    %85 = arith.addf %66, %84 : vector<2x32xf32>
    %86 = math.tanh %85 : vector<2x32xf32>
    %cst_33 = arith.constant dense<0.000000e+00> : vector<2x32xf32>
    %87 = tpu.matmul %86, %2, %cst_33 {dimension_numbers = #tpu.dot_dimension_numbers<[1], [0], [0], [1], [0, 0, 1, 1], [], []>} : vector<2x32xf32>, vector<32x32xf32>, vector<2x32xf32> -> vector<2x32xf32>
    %88 = arith.addf %67, %87 : vector<2x32xf32>
    %89 = math.tanh %88 : vector<2x32xf32>
    %c0_34 = arith.constant 0 : index
    %c0_35 = arith.constant 0 : index
    %90 = vector.load %arg9[%c0_34, %c0_35] : memref<32x4xf32, #tpu.memory_space<vmem>>, vector<32x4xf32>
    %cst_36 = arith.constant dense<0.000000e+00> : vector<2x4xf32>
    %91 = tpu.matmul %49, %90, %cst_36 {dimension_numbers = #tpu.dot_dimension_numbers<[1], [0], [0], [1], [0, 0, 1, 1], [], []>} : vector<2x32xf32>, vector<32x4xf32>, vector<2x4xf32> -> vector<2x4xf32>
    %c0_37 = arith.constant 0 : index
    %c0_38 = arith.constant 0 : index
    %92 = vector.load %arg10[%c0_37, %c0_38] : memref<32x4xf32, #tpu.memory_space<vmem>>, vector<32x4xf32>
    %cst_39 = arith.constant dense<0.000000e+00> : vector<2x4xf32>
    %93 = tpu.matmul %89, %92, %cst_39 {dimension_numbers = #tpu.dot_dimension_numbers<[1], [0], [0], [1], [0, 0, 1, 1], [], []>} : vector<2x32xf32>, vector<32x4xf32>, vector<2x4xf32> -> vector<2x4xf32>
    %94 = arith.addf %91, %93 : vector<2x4xf32>
    %c0_40 = arith.constant 0 : index
    %c0_41 = arith.constant 0 : index
    %95 = vector.load %arg11[%c0_40, %c0_41] : memref<1x4xf32, #tpu.memory_space<vmem>>, vector<1x4xf32>
    %96 = vector.broadcast %95 : vector<1x4xf32> to vector<2x4xf32>
    %97 = arith.addf %94, %96 : vector<2x4xf32>
    %c0_42 = arith.constant 0 : index
    %c0_43 = arith.constant 0 : index
    %98 = vector.load %arg12[%c0_42, %c0_43] : memref<2x4xf32, #tpu.memory_space<vmem>>, vector<2x4xf32>
    tpu.vector_store %arg12[%c0_42, %c0_43], %97 {strides = array<i32>} : memref<2x4xf32, #tpu.memory_space<vmem>>, vector<2x4xf32>,
    return
  }
}

</mosaic_0001>

<llo_original>
// kernel: rnn_forward.1
$region0: #{rnn_forward.1}
  #allocation0 [shape = 'u32[]', space=smem, size = 0x4, offset = 0x4, fixed_abs, tag = 'smem constant byte address 0x4 - core index']
  #allocation1 [shape = 'u32[72,128]{1,0:T(1,128)}', space=vmem, size = 0x9000, scoped, tag = 'internal scratch']
  %s0 = inlined_call_operand.vmem [shape: f32[16,32], index: 0, kind: input, shape index: {}]
  %s1 = inlined_call_operand.vmem [shape: f32[32,32], index: 1, kind: input, shape index: {}]
  %s2 = inlined_call_operand.vmem [shape: f32[32,32], index: 2, kind: input, shape index: {}]
  %s3 = inlined_call_operand.vmem [shape: f32[1,32], index: 3, kind: input, shape index: {}]
  %s4 = inlined_call_operand.vmem [shape: f32[32,32], index: 4, kind: input, shape index: {}]
  %s5 = inlined_call_operand.hbm [shape: f32[32,32], index: 5, kind: input, shape index: {}]
  %s6 = inlined_call_operand.hbm [shape: f32[32,32], index: 6, kind: input, shape index: {}]
  %s7 = inlined_call_operand.vmem [shape: f32[1,32], index: 7, kind: input, shape index: {}]
  %s8 = inlined_call_operand.hbm [shape: f32[32,32], index: 8, kind: input, shape index: {}]
  %s9 = inlined_call_operand.vmem [shape: f32[32,4], index: 9, kind: input, shape index: {}]
  %s10 = inlined_call_operand.vmem [shape: f32[32,4], index: 10, kind: input, shape index: {}]
  %s11 = inlined_call_operand.vmem [shape: f32[1,4], index: 11, kind: input, shape index: {}]
  %s12 = inlined_call_operand.hbm [shape: f32[2,4], index: 12, kind: output, shape index: {}]
  %s13 = sld [smem:[#allocation0]]
  $region70: #{rnn_forward.1} parent=0
    _
  %s15 = ssub.s32 1, %s13
  %s16 = scalar_select 0, %s15, %s13
  $region1: #{rnn_forward.1} parent=0
    #allocation2 [shape = 'u8[16384]{0}', space=vmem, size = 0x4000, scoped, tag = 'input window, operand 5, single buffered']
    #allocation3 [shape = 's32[1]{0}', space=sflag, size = 0x4, scoped, tag = 'scoped memory for rnn_forward.1']
    #allocation4 [shape = 's32[1]{0}', space=sflag, size = 0x4, scoped, tag = 'scoped memory for rnn_forward.1']
    #allocation5 [shape = 'u8[16384]{0}', space=vmem, size = 0x4000, scoped, tag = 'input window, operand 6, single buffered']
    #allocation6 [shape = 's32[1]{0}', space=sflag, size = 0x4, scoped, tag = 'scoped memory for rnn_forward.1']
    #allocation7 [shape = 'u8[16384]{0}', space=vmem, size = 0x4000, scoped, tag = 'input window, operand 8, single buffered']
    #allocation8 [shape = 'u8[1024]{0}', space=vmem, size = 0x400, scoped, tag = 'output window, operand 0, single buffered']
    %17 = vsyncpa [#allocation3], 0
    %18 = vsyncpa [#allocation6], 0
    %19 = vsyncpa [#allocation4], 0
    // Predicated region
    $region2: #{rnn_forward.1} parent=1 // pred_check
      _
    $region3: #{rnn_forward.1} parent=1 // pred_check_branch
      %21 = sbr.rel (0) target = $region5
    $region4: #{rnn_forward.1} parent=1 // pred_region
      _
    $region5: #{rnn_forward.1} parent=1 // pred_fallthru
      _
    // Predicated region
    $region6: #{rnn_forward.1} parent=1 // pred_check
      _
    $region7: #{rnn_forward.1} parent=1 // pred_check_branch
      %23 = sbr.rel (0) target = $region9
    $region8: #{rnn_forward.1} parent=1 // pred_region
      _
    $region9: #{rnn_forward.1} parent=1 // pred_fallthru
      _
    // Predicated region
    $region10: #{rnn_forward.1} parent=1 // pred_check
      _
    $region11: #{rnn_forward.1} parent=1 // pred_check_branch
      %25 = sbr.rel (0) target = $region13
    $region12: #{rnn_forward.1} parent=1 // pred_region
      _
    $region13: #{rnn_forward.1} parent=1 // pred_fallthru
      _
    // Predicated region
    $region14: #{rnn_forward.1} parent=1 // pred_check
      _
    $region15: #{rnn_forward.1} parent=1 // pred_check_branch
      %27 = sbr.rel (0) target = $region17
    $region16: #{rnn_forward.1} parent=1 // pred_region
      _
    $region17: #{rnn_forward.1} parent=1 // pred_fallthru
      _
    // Predicated region
    $region18: #{rnn_forward.1} parent=1 // pred_check
      _
    $region19: #{rnn_forward.1} parent=1 // pred_check_branch
      %29 = sbr.rel (0) target = $region21
    $region20: #{rnn_forward.1} parent=1 // pred_region
      _
    $region21: #{rnn_forward.1} parent=1 // pred_fallthru
      _
    // Predicated region
    $region22: #{rnn_forward.1} parent=1 // pred_check
      _
    $region23: #{rnn_forward.1} parent=1 // pred_check_branch
      %31 = sbr.rel (0) target = $region25
    $region24: #{rnn_forward.1} parent=1 // pred_region
      %33 = vsyncadd [#allocation3], 0
      %s34 = sshll.u32 %s5, 4
      %s35 = int_to_ptr.hbm [resolvable:$true] %s34
      %s36 = sshll.u32 [#allocation2], 4
      %s37 = int_to_ptr.vmem [resolvable:$true] %s36
      %42 = dma.hbm_to_vmem [thread:$0]  %s35, 512, %s37, [#allocation3], 128, 128, 8
    $region25: #{rnn_forward.1} parent=1 // pred_fallthru
      _
    // Predicated region
    $region26: #{rnn_forward.1} parent=1 // pred_check
      _
    $region27: #{rnn_forward.1} parent=1 // pred_check_branch
      %44 = sbr.rel (0) target = $region29
    $region28: #{rnn_forward.1} parent=1 // pred_region
      %46 = vsyncadd [#allocation6], 0
      %s47 = sshll.u32 %s6, 4
      %s48 = int_to_ptr.hbm [resolvable:$true] %s47
      %s49 = sshll.u32 [#allocation5], 4
      %s50 = int_to_ptr.vmem [resolvable:$true] %s49
      %55 = dma.hbm_to_vmem [thread:$0]  %s48, 512, %s50, [#allocation6], 128, 128, 8
    $region29: #{rnn_forward.1} parent=1 // pred_fallthru
      _
    // Predicated region
    $region30: #{rnn_forward.1} parent=1 // pred_check
      _
    $region31: #{rnn_forward.1} parent=1 // pred_check_branch
      %57 = sbr.rel (0) target = $region33
    $region32: #{rnn_forward.1} parent=1 // pred_region
      _
    $region33: #{rnn_forward.1} parent=1 // pred_fallthru
      _
    // Predicated region
    $region34: #{rnn_forward.1} parent=1 // pred_check
      _
    $region35: #{rnn_forward.1} parent=1 // pred_check_branch
      %59 = sbr.rel (0) target = $region37
    $region36: #{rnn_forward.1} parent=1 // pred_region
      %61 = vsyncadd [#allocation6], 0
      %s62 = sshll.u32 %s8, 4
      %s63 = int_to_ptr.hbm [resolvable:$true] %s62
      %s64 = sshll.u32 [#allocation7], 4
      %s65 = int_to_ptr.vmem [resolvable:$true] %s64
      %70 = dma.hbm_to_vmem [thread:$0]  %s63, 512, %s65, [#allocation6], 128, 128, 8
    $region37: #{rnn_forward.1} parent=1 // pred_fallthru
      _
    // Predicated region
    $region38: #{rnn_forward.1} parent=1 // pred_check
      _
    $region39: #{rnn_forward.1} parent=1 // pred_check_branch
      %72 = sbr.rel (0) target = $region41
    $region40: #{rnn_forward.1} parent=1 // pred_region
      _
    $region41: #{rnn_forward.1} parent=1 // pred_fallthru
      _
    // Predicated region
    $region42: #{rnn_forward.1} parent=1 // pred_check
      _
    $region43: #{rnn_forward.1} parent=1 // pred_check_branch
      %74 = sbr.rel (0) target = $region45
    $region44: #{rnn_forward.1} parent=1 // pred_region
      _
    $region45: #{rnn_forward.1} parent=1 // pred_fallthru
      _
    // Predicated region
    $region46: #{rnn_forward.1} parent=1 // pred_check
      _
    $region47: #{rnn_forward.1} parent=1 // pred_check_branch
      %76 = sbr.rel (0) target = $region49
    $region48: #{rnn_forward.1} parent=1 // pred_region
      _
    $region49: #{rnn_forward.1} parent=1 // pred_fallthru
      _
    // Predicated region
    $region50: #{rnn_forward.1} parent=1 // pred_check
      _
    $region51: #{rnn_forward.1} parent=1 // pred_check_branch
      %78 = sbr.rel (0) target = $region53
    $region52: #{rnn_forward.1} parent=1 // pred_region
      %80 = dma.done [#allocation3], 512
    $region53: #{rnn_forward.1} parent=1 // pred_fallthru
      _
    // Predicated region
    $region54: #{rnn_forward.1} parent=1 // pred_check
      _
    $region55: #{rnn_forward.1} parent=1 // pred_check_branch
      %82 = sbr.rel (0) target = $region57
    $region56: #{rnn_forward.1} parent=1 // pred_region
      %84 = dma.done [#allocation6], 512
    $region57: #{rnn_forward.1} parent=1 // pred_fallthru
      _
    // Predicated region
    $region58: #{rnn_forward.1} parent=1 // pred_check
      _
    $region59: #{rnn_forward.1} parent=1 // pred_check_branch
      %86 = sbr.rel (0) target = $region61
    $region60: #{rnn_forward.1} parent=1 // pred_region
      %88 = dma.done [#allocation6], 512
    $region61: #{rnn_forward.1} parent=1 // pred_fallthru
      _
    %v89 = vld [vmem:[%s0] sm:$0xff]
    %v90 = vld [vmem:[%s0 + $0x8] sm:$0xff]
    %v91 = vld [vmem:[%s4] sm:$0xff]
    %v92 = vld [vmem:[%s4 + $0x8] sm:$0xff]
    %v93 = vld [vmem:[%s4 + $0x10] sm:$0xff]
    %v94 = vld [vmem:[%s4 + $0x18] sm:$0xff]
    %v95 = vld [vmem:[#allocation7] sm:$0xff]
    %v96 = vld [vmem:[#allocation7 + $0x8] sm:$0xff]
    %v97 = vld [vmem:[#allocation7 + $0x10] sm:$0xff]
    %v98 = vld [vmem:[#allocation7 + $0x18] sm:$0xff]
    %v100 = vrot.slane %v90, 6
    %v102 = vrot.slane %v90, 2
    %v105 = vrot.slane %v89, 6
    %v107 = vrot.slane %v89, 2
    %vm109 = vcmask 1041408
    %v110 = vsel %vm109, %v100, %v102
    %vm111 = vcmask 1043456
    %v112 = vsel %vm111, %v110, %v100
    %vm113 = vcmask 1045504
    %v114 = vsel %vm113, %v112, %v102
    %v115 = vsel %vm109, %v105, %v107
    %v116 = vsel %vm111, %v115, %v105
    %v117 = vsel %vm113, %v116, %v107
    %v118 = vld [vmem:[%s1] sm:$0xff]
    %v119 = vld [vmem:[%s1 + $0x8] sm:$0xff]
    %v120 = vld [vmem:[%s1 + $0x10] sm:$0xff]
    %v121 = vld [vmem:[%s1 + $0x18] sm:$0xff]
    %v122 = vld [vmem:[%s2] sm:$0xff]
    %v123 = vld [vmem:[%s2 + $0x8] sm:$0xff]
    %v124 = vld [vmem:[%s2 + $0x10] sm:$0xff]
    %v125 = vld [vmem:[%s2 + $0x18] sm:$0xff]
    %vm126 = vcmask 261120
    %v128 = vsel %vm126, %v114, 0
    %v131 = vsel %vm126, %v117, 0
    %133 = vmatpush.msra.mxu0 0.0
    %134 = vmatpush.msra.mxu0 0.0
    %135 = vmatpush.msra.mxu0 0.0
    %136 = vmatpush.msra.mxu0 0.0
    %137 = vmatpush.msra.mxu0 0.0
    %138 = vmatpush.msra.mxu0 0.0
    %139 = vmatpush.msra.mxu0 0.0
    %140 = vmatpush.msra.mxu0 0.0
    %141 = vmatpush.msra.mxu0 0.0
    %142 = vmatpush.msra.mxu0 0.0
    %143 = vmatpush.msra.mxu0 0.0
    %144 = vmatpush.msra.mxu0 0.0
    %145 = vmatpush.msra.mxu0 %v125
    %146 = vmatpush.msra.mxu0 %v124
    %147 = vmatpush.msra.mxu0 %v123
    %148 = vmatpush.msra.mxu0 %v122
    %149 = vmatmul.f32.gmra.mxu0 %v128
    %v150 = vpop.f32.mrf.mxu0
    %v151 = vadd.f32 0.0, %v150
    %152 = vmatmul.f32.gmra.mxu0 %v131
    %v153 = vpop.f32.mrf.mxu0
    %v154 = vadd.f32 0.0, %v153
    %155 = vdwg.mxu0
    %v156 = vsel %vm126, %v89, 0
    %v158 = vsel %vm126, %v90, 0
    %160 = vmatpush.msra.mxu0 0.0
    %161 = vmatpush.msra.mxu0 0.0
    %162 = vmatpush.msra.mxu0 0.0
    %163 = vmatpush.msra.mxu0 0.0
    %164 = vmatpush.msra.mxu0 0.0
    %165 = vmatpush.msra.mxu0 0.0
    %166 = vmatpush.msra.mxu0 0.0
    %167 = vmatpush.msra.mxu0 0.0
    %168 = vmatpush.msra.mxu0 0.0
    %169 = vmatpush.msra.mxu0 0.0
    %170 = vmatpush.msra.mxu0 0.0
    %171 = vmatpush.msra.mxu0 0.0
    %172 = vmatpush.msra.mxu0 %v121
    %173 = vmatpush.msra.mxu0 %v120
    %174 = vmatpush.msra.mxu0 %v119
    %175 = vmatpush.msra.mxu0 %v118
    %176 = vmatmul.f32.gmra.mxu0 %v156
    %v177 = vpop.f32.mrf.mxu0
    %v178 = vadd.f32 %v151, %v177
    %179 = vmatmul.f32.gmra.mxu0 %v158
    %v180 = vpop.f32.mrf.mxu0
    %v181 = vadd.f32 %v154, %v180
    %182 = vdwg.mxu0
    %v183 = vld [vmem:[%s3] sm:$0x1]
    %v185 = vperm.slane %v183, 0
    %v187 = vadd.f32 %v178, %v185
    %v188 = vadd.f32 %v181, %v185
    %v189 = vtanh.pop %v187
    %v191 = vsel %vm126, %v189, 0
    %193 = vmatpush.msra.mxu0 0.0
    %194 = vmatpush.msra.mxu0 0.0
    %195 = vmatpush.msra.mxu0 0.0
    %196 = vmatpush.msra.mxu0 0.0
    %197 = vmatpush.msra.mxu0 0.0
    %198 = vmatpush.msra.mxu0 0.0
    %199 = vmatpush.msra.mxu0 0.0
    %200 = vmatpush.msra.mxu0 0.0
    %201 = vmatpush.msra.mxu0 0.0
    %202 = vmatpush.msra.mxu0 0.0
    %203 = vmatpush.msra.mxu0 0.0
    %204 = vmatpush.msra.mxu0 0.0
    %205 = vmatpush.msra.mxu0 %v94
    %206 = vmatpush.msra.mxu0 %v93
    %207 = vmatpush.msra.mxu0 %v92
    %208 = vmatpush.msra.mxu0 %v91
    %209 = vmatmul.f32.gmra.mxu0 %v191
    %v210 = vpop.f32.mrf.mxu0
    %v211 = vadd.f32 0.0, %v210
    %212 = vdwg.mxu0
    %v214 = vrot.slane %v211, 6
    %v216 = vadd.f32 %v187, %v214
    %v217 = vtanh.pop %v216
    %v219 = vrot.slane %v217, 2
    %v220 = vsel %vm126, %v219, 0
    %222 = vmatpush.msra.mxu0 0.0
    %223 = vmatpush.msra.mxu0 0.0
    %224 = vmatpush.msra.mxu0 0.0
    %225 = vmatpush.msra.mxu0 0.0
    %226 = vmatpush.msra.mxu0 0.0
    %227 = vmatpush.msra.mxu0 0.0
    %228 = vmatpush.msra.mxu0 0.0
    %229 = vmatpush.msra.mxu0 0.0
    %230 = vmatpush.msra.mxu0 0.0
    %231 = vmatpush.msra.mxu0 0.0
    %232 = vmatpush.msra.mxu0 0.0
    %233 = vmatpush.msra.mxu0 0.0
    %234 = vmatpush.msra.mxu0 %v94
    %235 = vmatpush.msra.mxu0 %v93
    %236 = vmatpush.msra.mxu0 %v92
    %237 = vmatpush.msra.mxu0 %v91
    %238 = vmatmul.f32.gmra.mxu0 %v220
    %v239 = vpop.f32.mrf.mxu0
    %v240 = vadd.f32 0.0, %v239
    %241 = vdwg.mxu0
    %v243 = vrot.slane %v240, 4
    %v245 = vadd.f32 %v187, %v243
    %v246 = vtanh.pop %v245
    %v248 = vrot.slane %v246, 4
    %v249 = vsel %vm126, %v248, 0
    %251 = vmatpush.msra.mxu0 0.0
    %252 = vmatpush.msra.mxu0 0.0
    %253 = vmatpush.msra.mxu0 0.0
    %254 = vmatpush.msra.mxu0 0.0
    %255 = vmatpush.msra.mxu0 0.0
    %256 = vmatpush.msra.mxu0 0.0
    %257 = vmatpush.msra.mxu0 0.0
    %258 = vmatpush.msra.mxu0 0.0
    %259 = vmatpush.msra.mxu0 0.0
    %260 = vmatpush.msra.mxu0 0.0
    %261 = vmatpush.msra.mxu0 0.0
    %262 = vmatpush.msra.mxu0 0.0
    %263 = vmatpush.msra.mxu0 %v94
    %264 = vmatpush.msra.mxu0 %v93
    %265 = vmatpush.msra.mxu0 %v92
    %266 = vmatpush.msra.mxu0 %v91
    %267 = vmatmul.f32.gmra.mxu0 %v249
    %v268 = vpop.f32.mrf.mxu0
    %v269 = vadd.f32 0.0, %v268
    %270 = vdwg.mxu0
    %v272 = vrot.slane %v269, 2
    %v274 = vadd.f32 %v187, %v272
    %v275 = vtanh.pop %v274
    %v277 = vrot.slane %v275, 6
    %v278 = vsel %vm126, %v277, 0
    %280 = vmatpush.msra.mxu0 0.0
    %281 = vmatpush.msra.mxu0 0.0
    %282 = vmatpush.msra.mxu0 0.0
    %283 = vmatpush.msra.mxu0 0.0
    %284 = vmatpush.msra.mxu0 0.0
    %285 = vmatpush.msra.mxu0 0.0
    %286 = vmatpush.msra.mxu0 0.0
    %287 = vmatpush.msra.mxu0 0.0
    %288 = vmatpush.msra.mxu0 0.0
    %289 = vmatpush.msra.mxu0 0.0
    %290 = vmatpush.msra.mxu0 0.0
    %291 = vmatpush.msra.mxu0 0.0
    %292 = vmatpush.msra.mxu0 %v94
    %293 = vmatpush.msra.mxu0 %v93
    %294 = vmatpush.msra.mxu0 %v92
    %295 = vmatpush.msra.mxu0 %v91
    %296 = vmatmul.f32.gmra.mxu0 %v278
    %v297 = vpop.f32.mrf.mxu0
    %v298 = vadd.f32 0.0, %v297
    %299 = vdwg.mxu0
    %v300 = vadd.f32 %v188, %v298
    %v301 = vtanh.pop %v300
    %v303 = vsel %vm126, %v301, 0
    %305 = vmatpush.msra.mxu0 0.0
    %306 = vmatpush.msra.mxu0 0.0
    %307 = vmatpush.msra.mxu0 0.0
    %308 = vmatpush.msra.mxu0 0.0
    %309 = vmatpush.msra.mxu0 0.0
    %310 = vmatpush.msra.mxu0 0.0
    %311 = vmatpush.msra.mxu0 0.0
    %312 = vmatpush.msra.mxu0 0.0
    %313 = vmatpush.msra.mxu0 0.0
    %314 = vmatpush.msra.mxu0 0.0
    %315 = vmatpush.msra.mxu0 0.0
    %316 = vmatpush.msra.mxu0 0.0
    %317 = vmatpush.msra.mxu0 %v94
    %318 = vmatpush.msra.mxu0 %v93
    %319 = vmatpush.msra.mxu0 %v92
    %320 = vmatpush.msra.mxu0 %v91
    %321 = vmatmul.f32.gmra.mxu0 %v303
    %v322 = vpop.f32.mrf.mxu0
    %v323 = vadd.f32 0.0, %v322
    %324 = vdwg.mxu0
    %v326 = vrot.slane %v323, 6
    %v328 = vadd.f32 %v188, %v326
    %v329 = vtanh.pop %v328
    %v331 = vrot.slane %v329, 2
    %v332 = vsel %vm126, %v331, 0
    %334 = vmatpush.msra.mxu0 0.0
    %335 = vmatpush.msra.mxu0 0.0
    %336 = vmatpush.msra.mxu0 0.0
    %337 = vmatpush.msra.mxu0 0.0
    %338 = vmatpush.msra.mxu0 0.0
    %339 = vmatpush.msra.mxu0 0.0
    %340 = vmatpush.msra.mxu0 0.0
    %341 = vmatpush.msra.mxu0 0.0
    %342 = vmatpush.msra.mxu0 0.0
    %343 = vmatpush.msra.mxu0 0.0
    %344 = vmatpush.msra.mxu0 0.0
    %345 = vmatpush.msra.mxu0 0.0
    %346 = vmatpush.msra.mxu0 %v94
    %347 = vmatpush.msra.mxu0 %v93
    %348 = vmatpush.msra.mxu0 %v92
    %349 = vmatpush.msra.mxu0 %v91
    %350 = vmatmul.f32.gmra.mxu0 %v332
    %v351 = vpop.f32.mrf.mxu0
    %v352 = vadd.f32 0.0, %v351
    %353 = vdwg.mxu0
    %v355 = vrot.slane %v352, 4
    %v357 = vadd.f32 %v188, %v355
    %v358 = vtanh.pop %v357
    %v360 = vrot.slane %v358, 4
    %v361 = vsel %vm126, %v360, 0
    %363 = vmatpush.msra.mxu0 0.0
    %364 = vmatpush.msra.mxu0 0.0
    %365 = vmatpush.msra.mxu0 0.0
    %366 = vmatpush.msra.mxu0 0.0
    %367 = vmatpush.msra.mxu0 0.0
    %368 = vmatpush.msra.mxu0 0.0
    %369 = vmatpush.msra.mxu0 0.0
    %370 = vmatpush.msra.mxu0 0.0
    %371 = vmatpush.msra.mxu0 0.0
    %372 = vmatpush.msra.mxu0 0.0
    %373 = vmatpush.msra.mxu0 0.0
    %374 = vmatpush.msra.mxu0 0.0
    %375 = vmatpush.msra.mxu0 %v94
    %376 = vmatpush.msra.mxu0 %v93
    %377 = vmatpush.msra.mxu0 %v92
    %378 = vmatpush.msra.mxu0 %v91
    %379 = vmatmul.f32.gmra.mxu0 %v361
    %v380 = vpop.f32.mrf.mxu0
    %v381 = vadd.f32 0.0, %v380
    %382 = vdwg.mxu0
    %v384 = vrot.slane %v381, 2
    %v386 = vadd.f32 %v188, %v384
    %v387 = vtanh.pop %v386
    %v388 = vsel %vm109, %v189, %v217
    %v389 = vsel %vm111, %v388, %v246
    %v390 = vsel %vm113, %v389, %v275
    %v391 = vsel %vm109, %v301, %v329
    %v392 = vsel %vm111, %v391, %v358
    %v393 = vsel %vm113, %v392, %v387
    %v395 = vrot.slane %v387, 6
    %v397 = vrot.slane %v358, 2
    %v399 = vrot.slane %v329, 6
    %v401 = vrot.slane %v301, 2
    %v404 = vrot.slane %v246, 2
    %v406 = vrot.slane %v217, 6
    %v408 = vrot.slane %v189, 2
    %v410 = vsel %vm109, %v395, %v397
    %v411 = vsel %vm111, %v410, %v399
    %v412 = vsel %vm113, %v411, %v401
    %v413 = vsel %vm109, %v277, %v404
    %v414 = vsel %vm111, %v413, %v406
    %v415 = vsel %vm113, %v414, %v408
    %v416 = vld [vmem:[#allocation2] sm:$0xff]
    %v417 = vld [vmem:[#allocation2 + $0x8] sm:$0xff]
    %v418 = vld [vmem:[#allocation2 + $0x10] sm:$0xff]
    %v419 = vld [vmem:[#allocation2 + $0x18] sm:$0xff]
    %v420 = vld [vmem:[#allocation5] sm:$0xff]
    %v421 = vld [vmem:[#allocation5 + $0x8] sm:$0xff]
    %v422 = vld [vmem:[#allocation5 + $0x10] sm:$0xff]
    %v423 = vld [vmem:[#allocation5 + $0x18] sm:$0xff]
    %v425 = vsel %vm126, %v412, 0
    %v428 = vsel %vm126, %v415, 0
    %430 = vmatpush.msra.mxu0 0.0
    %431 = vmatpush.msra.mxu0 0.0
    %432 = vmatpush.msra.mxu0 0.0
    %433 = vmatpush.msra.mxu0 0.0
    %434 = vmatpush.msra.mxu0 0.0
    %435 = vmatpush.msra.mxu0 0.0
    %436 = vmatpush.msra.mxu0 0.0
    %437 = vmatpush.msra.mxu0 0.0
    %438 = vmatpush.msra.mxu0 0.0
    %439 = vmatpush.msra.mxu0 0.0
    %440 = vmatpush.msra.mxu0 0.0
    %441 = vmatpush.msra.mxu0 0.0
    %442 = vmatpush.msra.mxu0 %v423
    %443 = vmatpush.msra.mxu0 %v422
    %444 = vmatpush.msra.mxu0 %v421
    %445 = vmatpush.msra.mxu0 %v420
    %446 = vmatmul.f32.gmra.mxu0 %v425
    %v447 = vpop.f32.mrf.mxu0
    %v448 = vadd.f32 0.0, %v447
    %449 = vmatmul.f32.gmra.mxu0 %v428
    %v450 = vpop.f32.mrf.mxu0
    %v451 = vadd.f32 0.0, %v450
    %452 = vdwg.mxu0
    %v454 = vsel %vm126, %v390, 0
    %v457 = vsel %vm126, %v393, 0
    %459 = vmatpush.msra.mxu0 0.0
    %460 = vmatpush.msra.mxu0 0.0
    %461 = vmatpush.msra.mxu0 0.0
    %462 = vmatpush.msra.mxu0 0.0
    %463 = vmatpush.msra.mxu0 0.0
    %464 = vmatpush.msra.mxu0 0.0
    %465 = vmatpush.msra.mxu0 0.0
    %466 = vmatpush.msra.mxu0 0.0
    %467 = vmatpush.msra.mxu0 0.0
    %468 = vmatpush.msra.mxu0 0.0
    %469 = vmatpush.msra.mxu0 0.0
    %470 = vmatpush.msra.mxu0 0.0
    %471 = vmatpush.msra.mxu0 %v419
    %472 = vmatpush.msra.mxu0 %v418
    %473 = vmatpush.msra.mxu0 %v417
    %474 = vmatpush.msra.mxu0 %v416
    %475 = vmatmul.f32.gmra.mxu0 %v454
    %v476 = vpop.f32.mrf.mxu0
    %v477 = vadd.f32 %v448, %v476
    %478 = vmatmul.f32.gmra.mxu0 %v457
    %v479 = vpop.f32.mrf.mxu0
    %v480 = vadd.f32 %v451, %v479
    %481 = vdwg.mxu0
    %v482 = vld [vmem:[%s7] sm:$0x1]
    %v484 = vperm.slane %v482, 0
    %v486 = vadd.f32 %v477, %v484
    %v487 = vadd.f32 %v480, %v484
    %v488 = vtanh.pop %v486
    %v490 = vsel %vm126, %v488, 0
    %492 = vmatpush.msra.mxu0 0.0
    %493 = vmatpush.msra.mxu0 0.0
    %494 = vmatpush.msra.mxu0 0.0
    %495 = vmatpush.msra.mxu0 0.0
    %496 = vmatpush.msra.mxu0 0.0
    %497 = vmatpush.msra.mxu0 0.0
    %498 = vmatpush.msra.mxu0 0.0
    %499 = vmatpush.msra.mxu0 0.0
    %500 = vmatpush.msra.mxu0 0.0
    %501 = vmatpush.msra.mxu0 0.0
    %502 = vmatpush.msra.mxu0 0.0
    %503 = vmatpush.msra.mxu0 0.0
    %504 = vmatpush.msra.mxu0 %v98
    %505 = vmatpush.msra.mxu0 %v97
    %506 = vmatpush.msra.mxu0 %v96
    %507 = vmatpush.msra.mxu0 %v95
    %508 = vmatmul.f32.gmra.mxu0 %v490
    %v509 = vpop.f32.mrf.mxu0
    %v510 = vadd.f32 0.0, %v509
    %511 = vdwg.mxu0
    %v513 = vrot.slane %v510, 6
    %v515 = vadd.f32 %v486, %v513
    %v516 = vtanh.pop %v515
    %v518 = vrot.slane %v516, 2
    %v519 = vsel %vm126, %v518, 0
    %521 = vmatpush.msra.mxu0 0.0
    %522 = vmatpush.msra.mxu0 0.0
    %523 = vmatpush.msra.mxu0 0.0
    %524 = vmatpush.msra.mxu0 0.0
    %525 = vmatpush.msra.mxu0 0.0
    %526 = vmatpush.msra.mxu0 0.0
    %527 = vmatpush.msra.mxu0 0.0
    %528 = vmatpush.msra.mxu0 0.0
    %529 = vmatpush.msra.mxu0 0.0
    %530 = vmatpush.msra.mxu0 0.0
    %531 = vmatpush.msra.mxu0 0.0
    %532 = vmatpush.msra.mxu0 0.0
    %533 = vmatpush.msra.mxu0 %v98
    %534 = vmatpush.msra.mxu0 %v97
    %535 = vmatpush.msra.mxu0 %v96
    %536 = vmatpush.msra.mxu0 %v95
    %537 = vmatmul.f32.gmra.mxu0 %v519
    %v538 = vpop.f32.mrf.mxu0
    %v539 = vadd.f32 0.0, %v538
    %540 = vdwg.mxu0
    %v542 = vrot.slane %v539, 4
    %v544 = vadd.f32 %v486, %v542
    %v545 = vtanh.pop %v544
    %v547 = vrot.slane %v545, 4
    %v548 = vsel %vm126, %v547, 0
    %550 = vmatpush.msra.mxu0 0.0
    %551 = vmatpush.msra.mxu0 0.0
    %552 = vmatpush.msra.mxu0 0.0
    %553 = vmatpush.msra.mxu0 0.0
    %554 = vmatpush.msra.mxu0 0.0
    %555 = vmatpush.msra.mxu0 0.0
    %556 = vmatpush.msra.mxu0 0.0
    %557 = vmatpush.msra.mxu0 0.0
    %558 = vmatpush.msra.mxu0 0.0
    %559 = vmatpush.msra.mxu0 0.0
    %560 = vmatpush.msra.mxu0 0.0
    %561 = vmatpush.msra.mxu0 0.0
    %562 = vmatpush.msra.mxu0 %v98
    %563 = vmatpush.msra.mxu0 %v97
    %564 = vmatpush.msra.mxu0 %v96
    %565 = vmatpush.msra.mxu0 %v95
    %566 = vmatmul.f32.gmra.mxu0 %v548
    %v567 = vpop.f32.mrf.mxu0
    %v568 = vadd.f32 0.0, %v567
    %569 = vdwg.mxu0
    %v571 = vrot.slane %v568, 2
    %v573 = vadd.f32 %v486, %v571
    %v574 = vtanh.pop %v573
    %v576 = vrot.slane %v574, 6
    %v577 = vsel %vm126, %v576, 0
    %579 = vmatpush.msra.mxu0 0.0
    %580 = vmatpush.msra.mxu0 0.0
    %581 = vmatpush.msra.mxu0 0.0
    %582 = vmatpush.msra.mxu0 0.0
    %583 = vmatpush.msra.mxu0 0.0
    %584 = vmatpush.msra.mxu0 0.0
    %585 = vmatpush.msra.mxu0 0.0
    %586 = vmatpush.msra.mxu0 0.0
    %587 = vmatpush.msra.mxu0 0.0
    %588 = vmatpush.msra.mxu0 0.0
    %589 = vmatpush.msra.mxu0 0.0
    %590 = vmatpush.msra.mxu0 0.0
    %591 = vmatpush.msra.mxu0 %v98
    %592 = vmatpush.msra.mxu0 %v97
    %593 = vmatpush.msra.mxu0 %v96
    %594 = vmatpush.msra.mxu0 %v95
    %595 = vmatmul.f32.gmra.mxu0 %v577
    %v596 = vpop.f32.mrf.mxu0
    %v597 = vadd.f32 0.0, %v596
    %598 = vdwg.mxu0
    %v599 = vadd.f32 %v487, %v597
    %v600 = vtanh.pop %v599
    %v602 = vsel %vm126, %v600, 0
    %604 = vmatpush.msra.mxu0 0.0
    %605 = vmatpush.msra.mxu0 0.0
    %606 = vmatpush.msra.mxu0 0.0
    %607 = vmatpush.msra.mxu0 0.0
    %608 = vmatpush.msra.mxu0 0.0
    %609 = vmatpush.msra.mxu0 0.0
    %610 = vmatpush.msra.mxu0 0.0
    %611 = vmatpush.msra.mxu0 0.0
    %612 = vmatpush.msra.mxu0 0.0
    %613 = vmatpush.msra.mxu0 0.0
    %614 = vmatpush.msra.mxu0 0.0
    %615 = vmatpush.msra.mxu0 0.0
    %616 = vmatpush.msra.mxu0 %v98
    %617 = vmatpush.msra.mxu0 %v97
    %618 = vmatpush.msra.mxu0 %v96
    %619 = vmatpush.msra.mxu0 %v95
    %620 = vmatmul.f32.gmra.mxu0 %v602
    %v621 = vpop.f32.mrf.mxu0
    %v622 = vadd.f32 0.0, %v621
    %623 = vdwg.mxu0
    %v625 = vrot.slane %v622, 6
    %v627 = vadd.f32 %v487, %v625
    %v628 = vtanh.pop %v627
    %v630 = vrot.slane %v628, 2
    %v631 = vsel %vm126, %v630, 0
    %633 = vmatpush.msra.mxu0 0.0
    %634 = vmatpush.msra.mxu0 0.0
    %635 = vmatpush.msra.mxu0 0.0
    %636 = vmatpush.msra.mxu0 0.0
    %637 = vmatpush.msra.mxu0 0.0
    %638 = vmatpush.msra.mxu0 0.0
    %639 = vmatpush.msra.mxu0 0.0
    %640 = vmatpush.msra.mxu0 0.0
    %641 = vmatpush.msra.mxu0 0.0
    %642 = vmatpush.msra.mxu0 0.0
    %643 = vmatpush.msra.mxu0 0.0
    %644 = vmatpush.msra.mxu0 0.0
    %645 = vmatpush.msra.mxu0 %v98
    %646 = vmatpush.msra.mxu0 %v97
    %647 = vmatpush.msra.mxu0 %v96
    %648 = vmatpush.msra.mxu0 %v95
    %649 = vmatmul.f32.gmra.mxu0 %v631
    %v650 = vpop.f32.mrf.mxu0
    %v651 = vadd.f32 0.0, %v650
    %652 = vdwg.mxu0
    %v654 = vrot.slane %v651, 4
    %v656 = vadd.f32 %v487, %v654
    %v657 = vtanh.pop %v656
    %v659 = vrot.slane %v657, 4
    %v660 = vsel %vm126, %v659, 0
    %662 = vmatpush.msra.mxu0 0.0
    %663 = vmatpush.msra.mxu0 0.0
    %664 = vmatpush.msra.mxu0 0.0
    %665 = vmatpush.msra.mxu0 0.0
    %666 = vmatpush.msra.mxu0 0.0
    %667 = vmatpush.msra.mxu0 0.0
    %668 = vmatpush.msra.mxu0 0.0
    %669 = vmatpush.msra.mxu0 0.0
    %670 = vmatpush.msra.mxu0 0.0
    %671 = vmatpush.msra.mxu0 0.0
    %672 = vmatpush.msra.mxu0 0.0
    %673 = vmatpush.msra.mxu0 0.0
    %674 = vmatpush.msra.mxu0 %v98
    %675 = vmatpush.msra.mxu0 %v97
    %676 = vmatpush.msra.mxu0 %v96
    %677 = vmatpush.msra.mxu0 %v95
    %678 = vmatmul.f32.gmra.mxu0 %v660
    %v679 = vpop.f32.mrf.mxu0
    %v680 = vadd.f32 0.0, %v679
    %681 = vdwg.mxu0
    %v683 = vrot.slane %v680, 2
    %v685 = vadd.f32 %v487, %v683
    %v686 = vtanh.pop %v685
    %v687 = vld [vmem:[%s9] sm:$0xff]
    %v688 = vld [vmem:[%s9 + $0x8] sm:$0xff]
    %v689 = vld [vmem:[%s9 + $0x10] sm:$0xff]
    %v690 = vld [vmem:[%s9 + $0x18] sm:$0xff]
    %v691 = vld [vmem:[%s10] sm:$0xff]
    %v692 = vld [vmem:[%s10 + $0x8] sm:$0xff]
    %v693 = vld [vmem:[%s10 + $0x10] sm:$0xff]
    %v694 = vld [vmem:[%s10 + $0x18] sm:$0xff]
    %v696 = vrot.slane %v686, 6
    %v697 = vsel %vm126, %v696, 0
    %699 = vmatpush.msra.mxu0 0.0
    %700 = vmatpush.msra.mxu0 0.0
    %701 = vmatpush.msra.mxu0 0.0
    %702 = vmatpush.msra.mxu0 0.0
    %703 = vmatpush.msra.mxu0 0.0
    %704 = vmatpush.msra.mxu0 0.0
    %705 = vmatpush.msra.mxu0 0.0
    %706 = vmatpush.msra.mxu0 0.0
    %707 = vmatpush.msra.mxu0 0.0
    %708 = vmatpush.msra.mxu0 0.0
    %709 = vmatpush.msra.mxu0 0.0
    %710 = vmatpush.msra.mxu0 0.0
    %711 = vmatpush.msra.mxu0 %v694
    %712 = vmatpush.msra.mxu0 %v693
    %713 = vmatpush.msra.mxu0 %v692
    %714 = vmatpush.msra.mxu0 %v691
    %715 = vmatmul.f32.gmra.mxu0 %v697
    %v716 = vpop.f32.mrf.mxu0
    %v717 = vadd.f32 0.0, %v716
    %718 = vdwg.mxu0
    %v719 = vsel %vm126, %v395, 0
    %721 = vmatpush.msra.mxu0 0.0
    %722 = vmatpush.msra.mxu0 0.0
    %723 = vmatpush.msra.mxu0 0.0
    %724 = vmatpush.msra.mxu0 0.0
    %725 = vmatpush.msra.mxu0 0.0
    %726 = vmatpush.msra.mxu0 0.0
    %727 = vmatpush.msra.mxu0 0.0
    %728 = vmatpush.msra.mxu0 0.0
    %729 = vmatpush.msra.mxu0 0.0
    %730 = vmatpush.msra.mxu0 0.0
    %731 = vmatpush.msra.mxu0 0.0
    %732 = vmatpush.msra.mxu0 0.0
    %733 = vmatpush.msra.mxu0 %v690
    %734 = vmatpush.msra.mxu0 %v689
    %735 = vmatpush.msra.mxu0 %v688
    %736 = vmatpush.msra.mxu0 %v687
    %737 = vmatmul.f32.gmra.mxu0 %v719
    %v738 = vpop.f32.mrf.mxu0
    %v739 = vadd.f32 %v717, %v738
    %740 = vdwg.mxu0
    %v741 = vld [vmem:[%s11] sm:$0x1]
    %v743 = vperm.slane %v741, 0
    %v745 = vadd.f32 %v739, %v743
    %vm746 = vcmask 25600
    %747 = vst.msk [vmem:[#allocation8] sm:$0x3] %vm746, %v745
    // Predicated region
    $region62: #{rnn_forward.1} parent=1 // pred_check
      _
    $region63: #{rnn_forward.1} parent=1 // pred_check_branch
      %749 = sbr.rel (0) target = $region65
    $region64: #{rnn_forward.1} parent=1 // pred_region
      %751 = vsyncadd [#allocation4], 0
      %s753 = sshll.u32 [#allocation8], 4
      %s754 = int_to_ptr.vmem [resolvable:$true] %s753
      %s755 = sshll.u32 %s12, 4
      %s756 = int_to_ptr.hbm [resolvable:$true] %s755
      %758 = dma.vmem_to_hbm [thread:$0]  %s754, 32, %s756, [#allocation4]
    $region65: #{rnn_forward.1} parent=1 // pred_fallthru
      _
    // Predicated region
    $region66: #{rnn_forward.1} parent=1 // pred_check
      _
    $region67: #{rnn_forward.1} parent=1 // pred_check_branch
      %760 = sbr.rel (0) target = $region69
    $region68: #{rnn_forward.1} parent=1 // pred_region
      %762 = dma.done [#allocation4], 32
    $region69: #{rnn_forward.1} parent=1 // pred_fallthru
      _
    %763 = vsyncpa [#allocation3], 1
    %764 = vsyncpa [#allocation6], 1
    %765 = vsyncpa [#allocation4], 1

</llo_original>
